<compile_context>
chip_gen: v7x
topology: tpu7x:2x2x1
jax: 0.10.0
libtpu: 0.0.40
codegen_flags: <defaults>
</compile_context>

<pallas_src>
import functools

import jax
import jax.numpy as jnp
from jax import lax
from jax.experimental import pallas as pl
from jax.experimental.pallas import tpu as pltpu


# ---------------------------------------------------------------------------
# helpers
# ---------------------------------------------------------------------------

def _pick_tile(total, target):
    """Largest tile <= target that is either the full dim or a multiple-of-8
    divisor of it (keeps BlockSpec shapes legal on TPU)."""
    if total <= target:
        return total
    t = target
    while t >= 8:
        if total % t == 0:
            return t
        t //= 2
    return total


def _vmem_limit(estimate_bytes):
    """Explicit scoped-VMEM limit: 4x headroom over the naive per-step estimate,
    floored at 32 MiB and capped at 48 MiB so it fits v7x's 64 MiB physical
    VMEM while still exceeding v5e's 16 MiB scoped default."""
    return int(min(max(4 * estimate_bytes, 32 * 1024 * 1024), 48 * 1024 * 1024))


# ---------------------------------------------------------------------------
# fused Q/K/V projection kernel (B*T flattened into the matmul M dimension)
# Emits a (3, M, D) output so the flash kernel can index q/k/v directly.
# ---------------------------------------------------------------------------

def _qkv_proj_kernel(x_ref, w_ref, qkv_ref, *, d):
    # x_ref: (tm, C); w_ref: (C, 3D); qkv_ref: (3, tm, D)
    acc = jnp.dot(x_ref[...], w_ref[...], preferred_element_type=jnp.float32)
    qkv_ref[0] = acc[:, 0 * d:1 * d].astype(qkv_ref.dtype)
    qkv_ref[1] = acc[:, 1 * d:2 * d].astype(qkv_ref.dtype)
    qkv_ref[2] = acc[:, 2 * d:3 * d].astype(qkv_ref.dtype)


def qkv_projection(x2d, w, *, d, out_dtype=None):
    """x2d: (M, C); w: (C, 3D).  Returns (3, M, D): stacked q/k/v projections."""
    M, C = x2d.shape
    N = w.shape[1]
    assert N == 3 * d
    out_dtype = out_dtype or x2d.dtype
    tm = _pick_tile(M, 512)   # mem-bound: bigger M tile -> closer to HBM roofline
    in_it = jnp.dtype(x2d.dtype).itemsize
    out_it = jnp.dtype(out_dtype).itemsize
    est = 2 * (tm * C + C * N) * in_it + 2 * 3 * tm * d * out_it + tm * N * 4
    return pl.pallas_call(
        functools.partial(_qkv_proj_kernel, d=d),
        out_shape=jax.ShapeDtypeStruct((3, M, d), out_dtype),
        grid_spec=pltpu.PrefetchScalarGridSpec(
            num_scalar_prefetch=0,
            grid=(M // tm,),
            in_specs=[
                pl.BlockSpec((tm, C), lambda i: (i, 0)),
                pl.BlockSpec((C, N), lambda i: (0, 0)),
            ],
            out_specs=pl.BlockSpec((3, tm, d), lambda i: (0, i, 0)),
        ),
        compiler_params=pltpu.CompilerParams(
            dimension_semantics=("parallel",),
            vmem_limit_bytes=_vmem_limit(est),
        ),
    )(x2d, w)


# ---------------------------------------------------------------------------
# flash-style causal attention kernel
# Grid = (B, step) where `step` enumerates only the lower-triangular (qi, ki)
# pairs via scalar-prefetched step->qi / step->ki maps.  Online-softmax
# accumulators live in VMEM scratch; the output block is revisited across the
# step axis and only written on the last contributing kv step for each qi.
# ---------------------------------------------------------------------------

def _flash_attn_kernel(qi_map_ref, ki_map_ref, q_ref, k_ref, v_ref, o_ref,
                       m_sc, l_sc, acc_sc, *, tq, tk):
    s_idx = pl.program_id(1)
    qi = qi_map_ref[s_idx]
    ki = ki_map_ref[s_idx]
    q_start = qi * tq
    k_start = ki * tk
    # Last contributing kv tile for this q tile (causal).
    last_ki = ((qi + 1) * tq - 1) // tk

    @pl.when(ki == 0)
    def _init():
        m_sc[...] = jnp.full_like(m_sc, -jnp.inf)
        l_sc[...] = jnp.zeros_like(l_sc)
        acc_sc[...] = jnp.zeros_like(acc_sc)

    def _update(apply_mask):
        q = q_ref[0, 0]          # (tq, D) — 1/sqrt(D) already folded into Wq
        k = k_ref[0, 0]          # (tk, D)
        v = v_ref[0, 0]          # (tk, D)
        # q @ k^T without materializing a transpose of k (contract dim 1 vs 1).
        s = lax.dot_general(
            q, k,
            dimension_numbers=(((1,), (1,)), ((), ())),
            preferred_element_type=jnp.float32,
        )                        # (tq, tk) f32
        if apply_mask:
            # Broadcasted (tq,1) vs (1,tk) iotas — no full (tq,tk) int32 tiles.
            rows = q_start + lax.broadcasted_iota(jnp.int32, (tq, 1), 0)
            cols = k_start + lax.broadcasted_iota(jnp.int32, (1, tk), 1)
            # Large finite negative (not -inf): avoids exp(-inf - -inf) = NaN
            # for rows whose tile entries are all masked.
            s = jnp.where(cols > rows, -1e30, s)

        m_prev = m_sc[0]                                            # (tq, 1)
        m_new = jnp.maximum(m_prev, jnp.max(s, axis=-1, keepdims=True))
        alpha = jnp.exp(m_prev - m_new)
        p = jnp.exp(s - m_new)                                      # (tq, tk) f32
        l_sc[0] = alpha * l_sc[0] + jnp.sum(p, axis=-1, keepdims=True)
        # p cast to the (bf16) MXU operand dtype; accumulation stays f32.
        acc_sc[0] = alpha * acc_sc[0] + jnp.dot(
            p.astype(v.dtype), v, preferred_element_type=jnp.float32)
        m_sc[0] = m_new

    # Only build the iota mask for tiles that straddle the diagonal; the step
    # enumeration already excludes fully-masked tiles (no DMA, no grid step).
    crosses_diagonal = (k_start + tk - 1) > q_start

    @pl.when(crosses_diagonal)
    def _masked_tile():
        _update(apply_mask=True)

    @pl.when(jnp.logical_not(crosses_diagonal))
    def _unmasked_tile():
        _update(apply_mask=False)

    @pl.when(ki == last_ki)
    def _finalize():
        l = l_sc[0]
        inv_l = pl.reciprocal(l, approx=True)      # EUP slot, ~free
        inv_l = inv_l * (2.0 - l * inv_l)          # one Newton-Raphson step
        o_ref[0] = (acc_sc[0] * inv_l).astype(o_ref.dtype)


def flash_attention(qkv, *, q_tile=256, kv_tile=256, out_dtype=None):
    """qkv: (3, B, T, D) stacked q/k/v.  Causal attention, softmax over keys.

    kv_tile=256 fills the 2x256 MXU on v6e/v7x; pass kv_tile=128 on v5e.
    """
    three, B, T, D = qkv.shape
    assert three == 3
    out_dtype = out_dtype or qkv.dtype
    tq = _pick_tile(T, q_tile)
    tk = _pick_tile(T, kv_tile)
    nq = T // tq
    nk = T // tk
    del nk  # steps are enumerated triangularly below

    # Lower-triangular step enumeration: step -> (qi, ki) with ki <= last(qi).
    steps_qi, steps_ki = [], []
    for qi in range(nq):
        last = ((qi + 1) * tq - 1) // tk
        for ki in range(last + 1):
            steps_qi.append(qi)
            steps_ki.append(ki)
    n_steps = len(steps_qi)
    qi_map = jnp.asarray(steps_qi, dtype=jnp.int32)
    ki_map = jnp.asarray(steps_ki, dtype=jnp.int32)

    kernel = functools.partial(_flash_attn_kernel, tq=tq, tk=tk)
    in_it = jnp.dtype(qkv.dtype).itemsize
    out_it = jnp.dtype(out_dtype).itemsize
    est = (2 * (tq * D + 2 * tk * D) * in_it   # double-buffered q/k/v tiles
           + 2 * tq * D * out_it               # output tile
           + (tq * D + 2 * tq) * 4             # f32 scratch acc/m/l
           + 2 * tq * tk * 4)                  # f32 s/p intermediates

    return pl.pallas_call(
        kernel,
        out_shape=jax.ShapeDtypeStruct((B, T, D), out_dtype),
        grid_spec=pltpu.PrefetchScalarGridSpec(
            num_scalar_prefetch=2,
            grid=(B, n_steps),
            in_specs=[
                pl.BlockSpec((1, 1, tq, D), lambda b, s, qm, km: (0, b, qm[s], 0)),
                pl.BlockSpec((1, 1, tk, D), lambda b, s, qm, km: (1, b, km[s], 0)),
                pl.BlockSpec((1, 1, tk, D), lambda b, s, qm, km: (2, b, km[s], 0)),
            ],
            out_specs=pl.BlockSpec((1, tq, D), lambda b, s, qm, km: (b, qm[s], 0)),
            scratch_shapes=[
                pltpu.VMEM((1, tq, 1), jnp.float32),   # running max m
                pltpu.VMEM((1, tq, 1), jnp.float32),   # running sum l
                pltpu.VMEM((1, tq, D), jnp.float32),   # output accumulator
            ],
        ),
        compiler_params=pltpu.CompilerParams(
            dimension_semantics=("parallel", "arbitrary"),
            vmem_limit_bytes=_vmem_limit(est),
        ),
    )(qi_map, ki_map, qkv, qkv, qkv)


# ---------------------------------------------------------------------------
# module-level wrapper (mirrors EinsumAttention.forward, eval mode)
# ---------------------------------------------------------------------------

def einsum_attention(x, wq, wk, wv, *, compute_dtype=jnp.bfloat16):
    """Forward pass of EinsumAttention (eval mode: dropout is identity).

    x:  [B, T, C] activations.
    wq/wk/wv: [D, C] nn.Linear weights (PyTorch layout, bias-free).
    compute_dtype: MXU operand dtype (default bf16 — native on v5e/v6e/v7x);
        accumulation and all softmax math stay f32.
    """
    B, T, C = x.shape
    D = wq.shape[0]
    scale = float(D) ** -0.5

    # Fold the 1/sqrt(D) score scale into the query projection weights and
    # stack the three projections into one (C, 3D) matmul RHS.
    w = jnp.concatenate([wq.T * scale, wk.T, wv.T], axis=1)   # (C, 3D)

    xc = x.reshape(B * T, C).astype(compute_dtype)
    wc = w.astype(compute_dtype)

    qkv = qkv_projection(xc, wc, d=D, out_dtype=compute_dtype)  # (3, B*T, D)
    qkv = qkv.reshape(3, B, T, D)                               # free reshape

    out = flash_attention(qkv, out_dtype=x.dtype)
    # Dropout(p) on attention probs is the identity in eval mode.
    return out


def reference_attention(x, wq, wk, wv):
    """Pure-JAX reference mirroring the PyTorch forward (eval mode)."""
    D = wq.shape[0]
    scale = float(D) ** -0.5
    q = jnp.einsum("btc,dc->btd", x, wq)
    k = jnp.einsum("btc,dc->btd", x, wk)
    v = jnp.einsum("btc,dc->btd", x, wv)
    attn = jnp.einsum("bqd,bkd->bqk", q, k) * scale
    T = x.shape[1]
    mask = jnp.triu(jnp.ones((T, T), dtype=bool), k=1)
    attn = jnp.where(mask[None, :, :], -jnp.inf, attn)
    attn = jax.nn.softmax(attn, axis=-1)
    return jnp.einsum("bqk,bkd->bqd", attn, v)


if __name__ == "__main__":
    # Module hyperparameters (small, consistent with the forward pass).
    B, T = 2, 8            # batch, sequence length (T <= block_size)
    n_embd = 32            # C
    head_size = 16         # D
    block_size = 8         # >= T
    dropout = 0.0          # eval-mode forward

    key = jax.random.PRNGKey(0)
    kx, kq, kk, kv = jax.random.split(key, 4)

    x = jax.random.normal(kx, (B, T, n_embd), dtype=jnp.float32)
    # nn.Linear weights in PyTorch layout: [head_size, n_embd].
    wq = jax.random.normal(kq, (head_size, n_embd), jnp.float32) * 0.1
    wk = jax.random.normal(kk, (head_size, n_embd), jnp.float32) * 0.1
    wv = jax.random.normal(kv, (head_size, n_embd), jnp.float32) * 0.1

    ref = reference_attention(x, wq, wk, wv)

    # Default (bf16 MXU operands, f32 accumulation) path.
    out = jax.block_until_ready(einsum_attention(x, wq, wk, wv))
    assert out.shape == (B, T, head_size)
    assert jnp.allclose(out, ref, atol=3e-2, rtol=3e-2), "bf16 path mismatch"

    # Full-f32 path (tight numerical check of kernel structure).
    out_f32 = jax.block_until_ready(
        einsum_attention(x, wq, wk, wv, compute_dtype=jnp.float32))
    assert jnp.allclose(out_f32, ref, atol=1e-4, rtol=1e-4), "f32 path mismatch"

    print("KERNEL_OK")
</pallas_src>

<mosaic_0001>
module attributes {stable_mosaic.version = 11 : i64} {
  func.func @_qkv_proj_kernel(%arg0: i32, %arg1: memref<16x32xbf16, #tpu.memory_space<vmem>>, %arg2: memref<32x48xbf16, #tpu.memory_space<vmem>>, %arg3: memref<3x16x16xbf16, #tpu.memory_space<vmem>>) attributes {dimension_semantics = [#tpu.dimension_semantics<parallel>], iteration_bounds = array<i64: 1>, scalar_prefetch = 0 : i64, scratch_operands = 0 : i64, tpu.core_type = #tpu.core_type<tc>, window_params = [{transform_indices = @transform_0, window_bounds = array<i64: 16, 32>}, {pipeline_mode = #tpu.pipeline_mode<synchronous>, transform_indices = @transform_1, window_bounds = array<i64: 32, 48>}, {transform_indices = @transform_2, window_bounds = array<i64: 3, 16, 16>}]} {
    %c0 = arith.constant 0 : index
    %c0_0 = arith.constant 0 : index
    %0 = vector.load %arg1[%c0, %c0_0] : memref<16x32xbf16, #tpu.memory_space<vmem>>, vector<16x32xbf16>
    %c0_1 = arith.constant 0 : index
    %c0_2 = arith.constant 0 : index
    %1 = vector.load %arg2[%c0_1, %c0_2] : memref<32x48xbf16, #tpu.memory_space<vmem>>, vector<32x48xbf16>
    %cst = arith.constant dense<0.000000e+00> : vector<16x48xf32>
    %2 = tpu.matmul %0, %1, %cst {dimension_numbers = #tpu.dot_dimension_numbers<[1], [0], [0], [1], [0, 0, 1, 1], [], []>} : vector<16x32xbf16>, vector<32x48xbf16>, vector<16x48xf32> -> vector<16x48xf32>
    %3 = vector.extract_strided_slice %2 {offsets = [0, 0], sizes = [16, 16], strides = [1, 1]} : vector<16x48xf32> to vector<16x16xf32>
    %4 = arith.truncf %3 : vector<16x16xf32> to vector<16x16xbf16>
    %c0_3 = arith.constant 0 : index
    %c0_4 = arith.constant 0 : index
    %c0_5 = arith.constant 0 : index
    %5 = vector.load %arg3[%c0_3, %c0_4, %c0_5] : memref<3x16x16xbf16, #tpu.memory_space<vmem>>, vector<1x16x16xbf16>
    %6 = vector.shape_cast %5 : vector<1x16x16xbf16> to vector<16x16xbf16>
    %7 = vector.shape_cast %4 : vector<16x16xbf16> to vector<1x16x16xbf16>
    tpu.vector_store %arg3[%c0_3, %c0_4, %c0_5], %7 {strides = array<i32>} : memref<3x16x16xbf16, #tpu.memory_space<vmem>>, vector<1x16x16xbf16>,
    %8 = vector.extract_strided_slice %2 {offsets = [0, 16], sizes = [16, 16], strides = [1, 1]} : vector<16x48xf32> to vector<16x16xf32>
    %9 = arith.truncf %8 : vector<16x16xf32> to vector<16x16xbf16>
    %c1 = arith.constant 1 : index
    %c0_6 = arith.constant 0 : index
    %c0_7 = arith.constant 0 : index
    %10 = vector.load %arg3[%c1, %c0_6, %c0_7] : memref<3x16x16xbf16, #tpu.memory_space<vmem>>, vector<1x16x16xbf16>
    %11 = vector.shape_cast %10 : vector<1x16x16xbf16> to vector<16x16xbf16>
    %12 = vector.shape_cast %9 : vector<16x16xbf16> to vector<1x16x16xbf16>
    tpu.vector_store %arg3[%c1, %c0_6, %c0_7], %12 {strides = array<i32>} : memref<3x16x16xbf16, #tpu.memory_space<vmem>>, vector<1x16x16xbf16>,
    %13 = vector.extract_strided_slice %2 {offsets = [0, 32], sizes = [16, 16], strides = [1, 1]} : vector<16x48xf32> to vector<16x16xf32>
    %14 = arith.truncf %13 : vector<16x16xf32> to vector<16x16xbf16>
    %c2 = arith.constant 2 : index
    %c0_8 = arith.constant 0 : index
    %c0_9 = arith.constant 0 : index
    %15 = vector.load %arg3[%c2, %c0_8, %c0_9] : memref<3x16x16xbf16, #tpu.memory_space<vmem>>, vector<1x16x16xbf16>
    %16 = vector.shape_cast %15 : vector<1x16x16xbf16> to vector<16x16xbf16>
    %17 = vector.shape_cast %14 : vector<16x16xbf16> to vector<1x16x16xbf16>
    tpu.vector_store %arg3[%c2, %c0_8, %c0_9], %17 {strides = array<i32>} : memref<3x16x16xbf16, #tpu.memory_space<vmem>>, vector<1x16x16xbf16>,
    return
  }
  func.func @transform_0(%arg0: i32) -> (i32, i32) {
    %c0_i32 = arith.constant 0 : i32
    %c0_i32_0 = arith.constant 0 : i32
    return %arg0, %c0_i32 : i32, i32
  }
  func.func @transform_1(%arg0: i32) -> (i32, i32) {
    %c0_i32 = arith.constant 0 : i32
    %c0_i32_0 = arith.constant 0 : i32
    %c0_i32_1 = arith.constant 0 : i32
    return %c0_i32, %c0_i32_0 : i32, i32
  }
  func.func @transform_2(%arg0: i32) -> (i32, i32, i32) {
    %c0_i32 = arith.constant 0 : i32
    %c0_i32_0 = arith.constant 0 : i32
    %c0_i32_1 = arith.constant 0 : i32
    return %c0_i32, %arg0, %c0_i32_0 : i32, i32, i32
  }
}

</mosaic_0001>

<llo_original>
// kernel: tpu_custom_call.1
$region0: #{tpu_custom_call.1}
  #allocation0 [shape = 'u32[]', space=smem, size = 0x4, offset = 0x4, fixed_abs, tag = 'smem constant byte address 0x4 - core index']
  #allocation1 [shape = 'u32[144,128]{1,0:T(1,128)}', space=vmem, size = 0x12000, scoped, tag = 'internal scratch']
  %s0 = inlined_call_operand.hbm [shape: bf16[16,32], index: 0, kind: input, shape index: {}]
  %s1 = inlined_call_operand.hbm [shape: bf16[32,48], index: 1, kind: input, shape index: {}]
  %s2 = inlined_call_operand.hbm [shape: bf16[3,16,16], index: 2, kind: output, shape index: {}]
  %s3 = sld [smem:[#allocation0]]
  $region26: #{tpu_custom_call.1} parent=0
    _
  %s5 = ssub.s32 1, %s3
  %s6 = scalar_select 0, %s5, %s3
  $region1: #{tpu_custom_call.1} parent=0
    #allocation2 [shape = 'u8[4096]{0}', space=vmem, size = 0x1000, scoped, tag = 'input window, operand 0, single buffered']
    #allocation3 [shape = 's32[1]{0}', space=sflag, size = 0x4, scoped, tag = 'scoped memory for tpu_custom_call.1']
    #allocation4 [shape = 's32[1]{0}', space=sflag, size = 0x4, scoped, tag = 'scoped memory for tpu_custom_call.1']
    #allocation5 [shape = 'u8[8192]{0}', space=vmem, size = 0x2000, scoped, tag = 'input window, operand 1, single buffered']
    #allocation6 [shape = 's32[1]{0}', space=sflag, size = 0x4, scoped, tag = 'scoped memory for tpu_custom_call.1']
    #allocation7 [shape = 'u8[12288]{0}', space=vmem, size = 0x3000, scoped, tag = 'output window, operand 0, single buffered']
    %7 = vsyncpa [#allocation3], 0
    %8 = vsyncpa [#allocation6], 0
    %9 = vsyncpa [#allocation4], 0
    // Predicated region
    $region2: #{tpu_custom_call.1} parent=1 // pred_check
      _
    $region3: #{tpu_custom_call.1} parent=1 // pred_check_branch
      %11 = sbr.rel (0) target = $region5
    $region4: #{tpu_custom_call.1} parent=1 // pred_region
      %s13 = ssub.s32 128, 128
      %14 = vsyncadd [#allocation3], %s13
      %s15 = sshll.u32 [#allocation2], 4
      %s16 = int_to_ptr.vmem [resolvable:$true] %s15
      %21 = dma.hbm_to_vmem [thread:$0]  %s0, 128, %s16, [#allocation3], 64, 64, 4
    $region5: #{tpu_custom_call.1} parent=1 // pred_fallthru
      _
    // Predicated region
    $region6: #{tpu_custom_call.1} parent=1 // pred_check
      _
    $region7: #{tpu_custom_call.1} parent=1 // pred_check_branch
      %23 = sbr.rel (0) target = $region9
    $region8: #{tpu_custom_call.1} parent=1 // pred_region
      %s25 = ssub.s32 256, 256
      %26 = vsyncadd [#allocation6], %s25
      %s27 = sshll.u32 [#allocation5], 4
      %s28 = int_to_ptr.vmem [resolvable:$true] %s27
      %33 = dma.hbm_to_vmem [thread:$0]  %s1, 256, %s28, [#allocation6], 64, 64, 4
    $region9: #{tpu_custom_call.1} parent=1 // pred_fallthru
      _
    // Predicated region
    $region10: #{tpu_custom_call.1} parent=1 // pred_check
      _
    $region11: #{tpu_custom_call.1} parent=1 // pred_check_branch
      %35 = sbr.rel (0) target = $region13
    $region12: #{tpu_custom_call.1} parent=1 // pred_region
      %36 = dma.done [#allocation3], 128
    $region13: #{tpu_custom_call.1} parent=1 // pred_fallthru
      _
    // Predicated region
    $region14: #{tpu_custom_call.1} parent=1 // pred_check
      _
    $region15: #{tpu_custom_call.1} parent=1 // pred_check_branch
      %38 = sbr.rel (0) target = $region17
    $region16: #{tpu_custom_call.1} parent=1 // pred_region
      %39 = dma.done [#allocation6], 256
    $region17: #{tpu_custom_call.1} parent=1 // pred_fallthru
      _
    %v41 = vld [vmem:[#allocation2] sm:$0xf]
    %v42 = vld [vmem:[#allocation2 + $0x4] sm:$0xf]
    %v43 = vld [vmem:[#allocation5] sm:$0xf]
    %v44 = vld [vmem:[#allocation5 + $0x4] sm:$0xf]
    %v45 = vld [vmem:[#allocation5 + $0x8] sm:$0xf]
    %v46 = vld [vmem:[#allocation5 + $0xc] sm:$0xf]
    %v49 = vunpack.c.l.b16 %v41
    %v50 = vunpack.c.l.b16 %v42
    %v51 = vpack.c.b16 %v50, %v49
    %v56 = vunpack.c.l.b16 %v43
    %v57 = vunpack.c.l.b16 %v44
    %v58 = vunpack.c.l.b16 %v45
    %v59 = vunpack.c.l.b16 %v46
    %v60 = vpack.c.b16 %v57, %v56
    %v61 = vpack.c.b16 %v59, %v58
    %vm64 = vcmask 261120
    %v66 = vsel %vm64, %v51, 0
    %68 = vmatprep.subr.bf16.mxu0 0
    %69 = vmatpush1.bf16.msra.mxu0 %v60
    %70 = vmatprep.subr.bf16.mxu0 0
    %71 = vmatpush1.bf16.msra.mxu0 %v61
    %72 = vmatprep.subr.bf16.mxu0 0
    %73 = vmatpush1.bf16.msra.mxu0 0
    %74 = vmatprep.subr.bf16.mxu0 0
    %75 = vmatpush1.bf16.msra.mxu0 0
    %76 = vmatprep.subr.bf16.mxu0 0
    %77 = vmatpush1.bf16.msra.mxu0 0
    %78 = vmatprep.subr.bf16.mxu0 0
    %79 = vmatpush1.bf16.msra.mxu0 0
    %80 = vmatprep.subr.bf16.mxu0 0
    %81 = vmatpush1.bf16.msra.mxu0 0
    %82 = vmatprep.subr.bf16.mxu0 0
    %83 = vmatpush1.bf16.msra.mxu0 0
    %84 = vmatprep.subr.bf16.mxu0 0
    %85 = vmatpush1.bf16.msra.mxu0 0
    %86 = vmatprep.subr.bf16.mxu0 0
    %87 = vmatpush1.bf16.msra.mxu0 0
    %88 = vmatprep.subr.bf16.mxu0 0
    %89 = vmatpush1.bf16.msra.mxu0 0
    %90 = vmatprep.subr.bf16.mxu0 0
    %91 = vmatpush1.bf16.msra.mxu0 0
    %92 = vmatprep.subr.bf16.mxu0 0
    %93 = vmatpush1.bf16.msra.mxu0 0
    %94 = vmatprep.subr.bf16.mxu0 0
    %95 = vmatpush1.bf16.msra.mxu0 0
    %96 = vmatprep.subr.bf16.mxu0 0
    %97 = vmatpush1.bf16.msra.mxu0 0
    %98 = vmatprep.subr.bf16.mxu0 0
    %99 = vmatpush1.bf16.msra.mxu0 0
    %100 = vmatprep.mubr.bf16.mxu0 0
    %101 = vmatmul.mubr.bf16.gmra.mrb[0].mxu0 %v66
    %v102 = vpop.f32.mrb[0].mxu0
    %v103 = vadd.f32 0.0, %v102
    %v104 = vpop.f32.mrb[0].mxu0
    %v105 = vpop.f32.mrb[0].mxu0
    %v106 = vadd.f32 0.0, %v105
    %v107 = vpop.f32.mrb[0].mxu0
    %108 = vdwg.mxu0
    %v109 = vpack.c.bf16 %v106, %v103
    %v111 = vunpack.c.l.b16 %v109
    %v112 = vunpack.c.h.b16 %v109
    %v113 = vpack.c.b16 %v111, %v111
    %v114 = vpack.c.b16 %v112, %v112
    %vm117 = vcmask 125952
    %118 = vst.msk [vmem:[#allocation7] sm:$0xf] %vm117, %v113
    %119 = vst.msk [vmem:[#allocation7 + $0x4] sm:$0xf] %vm117, %v114
    %120 = vrot.lane.b32.xlu0 %v113, 112
    %v121 = vpop.permute.xlu0 %120
    %122 = vrot.lane.b32.xlu0 %v114, 112
    %v123 = vpop.permute.xlu0 %122
    %s126 = scalar_lea.vmem [#allocation7], 8
    %127 = vst.msk [vmem:[%s126] sm:$0xf] %vm117, %v121
    %128 = vst.msk [vmem:[%s126 + $0x4] sm:$0xf] %vm117, %v123
    %129 = vrot.lane.b32.xlu0 %v113, 96
    %v130 = vpop.permute.xlu0 %129
    %131 = vrot.lane.b32.xlu0 %v114, 96
    %v132 = vpop.permute.xlu0 %131
    %s135 = scalar_lea.vmem [#allocation7], 16
    %136 = vst.msk [vmem:[%s135] sm:$0xf] %vm117, %v130
    %137 = vst.msk [vmem:[%s135 + $0x4] sm:$0xf] %vm117, %v132
    // Predicated region
    $region18: #{tpu_custom_call.1} parent=1 // pred_check
      _
    $region19: #{tpu_custom_call.1} parent=1 // pred_check_branch
      %139 = sbr.rel (0) target = $region21
    $region20: #{tpu_custom_call.1} parent=1 // pred_region
      %s141 = ssub.s32 384, 384
      %142 = vsyncadd [#allocation4], %s141
      %s143 = sshll.u32 [#allocation7], 4
      %s144 = int_to_ptr.vmem [resolvable:$true] %s143
      %149 = dma.vmem_to_hbm [thread:$0]  %s144, 384, %s2, [#allocation4], 64, 64, 4
    $region21: #{tpu_custom_call.1} parent=1 // pred_fallthru
      _
    // Predicated region
    $region22: #{tpu_custom_call.1} parent=1 // pred_check
      _
    $region23: #{tpu_custom_call.1} parent=1 // pred_check_branch
      %151 = sbr.rel (0) target = $region25
    $region24: #{tpu_custom_call.1} parent=1 // pred_region
      %152 = dma.done [#allocation4], 384
    $region25: #{tpu_custom_call.1} parent=1 // pred_fallthru
      _
    %153 = vsyncpa [#allocation3], 1
    %154 = vsyncpa [#allocation6], 1
    %155 = vsyncpa [#allocation4], 1

</llo_original>
